<compile_context>
chip_gen: v7x
topology: tpu7x:2x2x1
jax: 0.10.0
libtpu: 0.0.40
codegen_flags: <defaults>
</compile_context>

<pallas_src>
import functools

import jax
import jax.numpy as jnp
from jax.experimental import pallas as pl
from jax.experimental.pallas import tpu as pltpu


def _round_up(x, m):
    return ((x + m - 1) // m) * m


def _qa_ce_partial_kernel(logits_ref, headmask_ref, target_ref, out_ref, *,
                          ignored_index, batch):
    """Per-tile partial (sum of NLL, valid count) for the start/end heads.

    logits_ref   : (TB, 2*S) native-dtype VMEM -- row-major view of (TB, S, 2);
                   even lanes = start-head logits, odd lanes = end-head logits.
    headmask_ref : (2*S, 128) f32 VMEM -- col 0 = even-lane indicator,
                   col 1 = odd-lane indicator (for MXU head sums); resident.
    target_ref   : (TB, 2) int32 VMEM -- (start_position, end_position).
    out_ref      : (1, 8, 128) f32 VMEM -- sublane 0, lanes 0..3 hold
                   [sum_nll_start, sum_nll_end, cnt_start, cnt_end].
    """
    x = logits_ref[...]                                           # (TB, 2S) native dtype
    tb, two_s = x.shape

    lane = jax.lax.broadcasted_iota(jnp.int32, (tb, two_s), 1)
    is_start = (lane & 1) == 0                                    # even lane -> start head

    # target.clamp_(0, ignored_index)
    tgt = jnp.clip(target_ref[...], 0, ignored_index)             # (TB, 2) int32
    tgt_s = tgt[:, 0:1]                                           # (TB, 1)
    tgt_e = tgt[:, 1:2]

    # Per-head max in native dtype (cheap bf16 vregs on v6e/v7x; exact for f32).
    m_s = jnp.max(jnp.where(is_start, x, -jnp.inf), axis=-1, keepdims=True)   # (TB, 1)
    m_e = jnp.max(jnp.where(is_start, -jnp.inf, x), axis=-1, keepdims=True)   # (TB, 1)
    m_sel = jnp.where(is_start, m_s, m_e)                                     # (TB, 2S)

    # exp / accumulation path in f32 for accuracy.
    x32 = x.astype(jnp.float32)
    ex = jnp.exp(x32 - m_sel.astype(jnp.float32))                             # (TB, 2S)

    # Head-wise exp sums on the idle MXU (HIGHEST keeps f32 accumulation accuracy).
    sums = jax.lax.dot_general(
        ex, headmask_ref[...],
        dimension_numbers=(((1,), (0,)), ((), ())),
        preferred_element_type=jnp.float32,
        precision=jax.lax.Precision.HIGHEST)                                  # (TB, 128)
    sum_s = sums[:, 0:1]
    sum_e = sums[:, 1:2]
    lse_s = m_s.astype(jnp.float32) + jnp.log(sum_s)
    lse_e = m_e.astype(jnp.float32) + jnp.log(sum_e)

    # Target-logit gather: direct lane compare (start targets live on even lane
    # 2*t, end targets on odd lane 2*t+1).  One non-zero term per row -> the
    # native-dtype masked sum is exact; upcast only the (TB,1) result.
    tl_s = jnp.sum(jnp.where(lane == 2 * tgt_s, x, 0), axis=-1, keepdims=True)
    tl_e = jnp.sum(jnp.where(lane == 2 * tgt_e + 1, x, 0), axis=-1, keepdims=True)

    nll_s = lse_s - tl_s.astype(jnp.float32)                                  # (TB, 1)
    nll_e = lse_e - tl_e.astype(jnp.float32)

    # Validity: real batch row (last tile may be padded) AND target != ignore_index.
    row = jax.lax.broadcasted_iota(jnp.int32, (tb, 1), 0) + pl.program_id(0) * tb
    in_range = row < batch
    v_s = in_range & (tgt_s != ignored_index)
    v_e = in_range & (tgt_e != ignored_index)

    # jnp.where (select, not multiply) so garbage/NaN in padded rows cannot leak in.
    sum_nll_s = jnp.sum(jnp.where(v_s, nll_s, 0.0), axis=0, keepdims=True)    # (1, 1)
    sum_nll_e = jnp.sum(jnp.where(v_e, nll_e, 0.0), axis=0, keepdims=True)
    cnt_s = jnp.sum(v_s.astype(jnp.float32), axis=0, keepdims=True)
    cnt_e = jnp.sum(v_e.astype(jnp.float32), axis=0, keepdims=True)

    # Lane-dense partial slab: lanes 0..3 = [sum_s, sum_e, cnt_s, cnt_e], rest zero.
    out_lane = jax.lax.broadcasted_iota(jnp.int32, (8, 128), 1)
    slab = (jnp.where(out_lane == 0, sum_nll_s, 0.0)
            + jnp.where(out_lane == 1, sum_nll_e, 0.0)
            + jnp.where(out_lane == 2, cnt_s, 0.0)
            + jnp.where(out_lane == 3, cnt_e, 0.0))
    out_ref[0] = slab


def cross_entropy_qa_loss(output, target, ignored_index):
    """output: (B, S, 2) logits (any float dtype); target: (B, 2) int positions."""
    B, S, two = output.shape
    assert two == 2, "expected start/end logits stacked in the last dim"

    # Free, layout-preserving view: (B, S, 2) -> (B, 2*S); heads interleave on lanes.
    # TODO(synk): if the upstream QA head can emit the two heads de-interleaved,
    # all lane masking below disappears and the kernel runs at the HBM roofline.
    logits2d = output.reshape(B, 2 * S)          # native dtype, no upcast in HBM
    tgt = target.astype(jnp.int32)               # (B, 2)

    # Constant per-head lane-indicator matrix for the MXU head sums.
    lane_idx = jnp.arange(2 * S)
    head_mask = jnp.zeros((2 * S, 128), jnp.float32)
    head_mask = head_mask.at[:, 0].set((lane_idx % 2 == 0).astype(jnp.float32))
    head_mask = head_mask.at[:, 1].set((lane_idx % 2 == 1).astype(jnp.float32))

    # Batch tiling:
    #   * ~1 MiB native block (double-buffered + f32 temps stays well inside
    #     v5e's 16 MiB scoped-VMEM default, and v7x's 32 MiB default),
    #   * rounded to the dtype's sublane packing (f32:8, bf16:16, 8-bit:32),
    #   * capped so the grid has >= 4 tiles when B allows, so the "parallel"
    #     batch axis can shard across v7x's 2 TensorCores with pipeline overlap.
    itemsize = logits2d.dtype.itemsize
    sub = {4: 8, 2: 16, 1: 32}.get(itemsize, 8)
    bytes_per_row = 2 * S * itemsize
    tb = max(1, (1 << 20) // bytes_per_row)
    tb = min(tb, _round_up(pl.cdiv(B, 4), sub))
    if tb >= B:
        tb = B                                   # block == full dim is always legal
    else:
        tb = max(sub, (tb // sub) * sub)
    num_tiles = pl.cdiv(B, tb)

    partials = pl.pallas_call(
        functools.partial(_qa_ce_partial_kernel,
                          ignored_index=int(ignored_index), batch=B),
        out_shape=jax.ShapeDtypeStruct((num_tiles, 8, 128), jnp.float32),
        grid=(num_tiles,),
        in_specs=[
            pl.BlockSpec((tb, 2 * S), lambda i: (i, 0)),
            pl.BlockSpec((2 * S, 128), lambda i: (0, 0)),   # constant block: stays resident
            pl.BlockSpec((tb, 2), lambda i: (i, 0)),
        ],
        out_specs=pl.BlockSpec((1, 8, 128), lambda i: (i, 0, 0)),
        compiler_params=pltpu.CompilerParams(
            dimension_semantics=("parallel",)),   # lets v7x shard tiles across its 2 TCs
    )(logits2d, head_mask, tgt)

    # Tiny final reduce: exact (sum, count) accumulation, divide only once.
    totals = jnp.sum(partials[:, 0, :4], axis=0)  # [sum_s, sum_e, cnt_s, cnt_e]
    start_loss = totals[0] / totals[2]
    end_loss = totals[1] / totals[3]
    return 0.5 * (start_loss + end_loss)


def _reference(output, target, ignored_index):
    """Pure-JAX mirror of torch.nn.CrossEntropyLoss(ignore_index=...) per head."""
    logits = output.astype(jnp.float32)
    tgt = jnp.clip(target.astype(jnp.int32), 0, ignored_index)

    def head(lg, t):
        logp = jax.nn.log_softmax(lg, axis=-1)
        picked = jnp.take_along_axis(logp, t[:, None], axis=-1)[:, 0]
        valid = (t != ignored_index).astype(jnp.float32)
        return jnp.sum(-picked * valid) / jnp.sum(valid)

    return 0.5 * (head(logits[:, :, 0], tgt[:, 0]) + head(logits[:, :, 1], tgt[:, 1]))


if __name__ == "__main__":
    key = jax.random.PRNGKey(0)
    k1, k2 = jax.random.split(key)

    B, S = 8, 128
    ignored_index = S  # typical usage: positions clamped to seq length are ignored

    output = jax.random.normal(k1, (B, S, 2), dtype=jnp.float32)
    # include out-of-range positions to exercise clamp_ and ignore_index
    target = jax.random.randint(k2, (B, 2), -3, S + 4, dtype=jnp.int32)

    loss_fn = jax.jit(cross_entropy_qa_loss, static_argnums=2)
    loss = jax.block_until_ready(loss_fn(output, target, ignored_index))

    ref = _reference(output, target, ignored_index)
    assert jnp.allclose(loss, ref, atol=2e-4, rtol=2e-4), (loss, ref)

    print("KERNEL_OK")
</pallas_src>

<mosaic_0001>
module attributes {stable_mosaic.version = 11 : i64} {
  func.func @_qa_ce_partial_kernel(%arg0: i32, %arg1: memref<8x256xf32, #tpu.memory_space<vmem>>, %arg2: memref<256x128xf32, #tpu.memory_space<vmem>>, %arg3: memref<8x2xi32, #tpu.memory_space<vmem>>, %arg4: memref<1x8x128xf32, #tpu.memory_space<vmem>>) attributes {dimension_semantics = [#tpu.dimension_semantics<parallel>], iteration_bounds = array<i64: 1>, scalar_prefetch = 0 : i64, scratch_operands = 0 : i64, tpu.core_type = #tpu.core_type<tc>, window_params = [{transform_indices = @transform_0, window_bounds = array<i64: 8, 256>}, {pipeline_mode = #tpu.pipeline_mode<synchronous>, transform_indices = @transform_1, window_bounds = array<i64: 256, 128>}, {transform_indices = @transform_2, window_bounds = array<i64: 8, 2>}, {transform_indices = @transform_3, window_bounds = array<i64: 1, 8, 128>}]} {
    %c0 = arith.constant 0 : index
    %c0_0 = arith.constant 0 : index
    %0 = vector.load %arg1[%c0, %c0_0] : memref<8x256xf32, #tpu.memory_space<vmem>>, vector<8x256xf32>
    %1 = tpu.iota {dimensions = array<i32: 1>} : vector<8x256xi32>
    %c1_i32 = arith.constant 1 : i32
    %2 = vector.broadcast %c1_i32 : i32 to vector<8x256xi32>
    %3 = arith.andi %1, %2 : vector<8x256xi32>
    %c0_i32 = arith.constant 0 : i32
    %4 = vector.broadcast %c0_i32 : i32 to vector<8x256xi32>
    %5 = arith.cmpi eq, %3, %4 : vector<8x256xi32>
    %c0_1 = arith.constant 0 : index
    %c0_2 = arith.constant 0 : index
    %6 = vector.load %arg3[%c0_1, %c0_2] : memref<8x2xi32, #tpu.memory_space<vmem>>, vector<8x2xi32>
    %c0_i32_3 = arith.constant 0 : i32
    %c128_i32 = arith.constant 128 : i32
    %7 = vector.broadcast %c0_i32_3 : i32 to vector<8x2xi32>
    %8 = arith.maxsi %7, %6 : vector<8x2xi32>
    %9 = vector.broadcast %c128_i32 : i32 to vector<8x2xi32>
    %10 = arith.minsi %9, %8 : vector<8x2xi32>
    %11 = vector.extract_strided_slice %10 {offsets = [0, 0], sizes = [8, 1], strides = [1, 1]} : vector<8x2xi32> to vector<8x1xi32>
    %12 = vector.extract_strided_slice %10 {offsets = [0, 1], sizes = [8, 1], strides = [1, 1]} : vector<8x2xi32> to vector<8x1xi32>
    %cst = arith.constant 0xFF800000 : f32
    %13 = vector.broadcast %cst : f32 to vector<8x256xf32>
    %14 = arith.select %5, %0, %13 : vector<8x256xi1>, vector<8x256xf32>
    %cst_4 = arith.constant dense<0xFF800000> : vector<8xf32>
    %15 = vector.multi_reduction <maximumf>, %14, %cst_4 [1] : vector<8x256xf32> to vector<8xf32>
    %16 = vector.shape_cast %15 : vector<8xf32> to vector<8x1xf32>
    %cst_5 = arith.constant 0xFF800000 : f32
    %17 = vector.broadcast %cst_5 : f32 to vector<8x256xf32>
    %18 = arith.select %5, %17, %0 : vector<8x256xi1>, vector<8x256xf32>
    %cst_6 = arith.constant dense<0xFF800000> : vector<8xf32>
    %19 = vector.multi_reduction <maximumf>, %18, %cst_6 [1] : vector<8x256xf32> to vector<8xf32>
    %20 = vector.shape_cast %19 : vector<8xf32> to vector<8x1xf32>
    %21 = vector.shape_cast %16 : vector<8x1xf32> to vector<8x1xf32>
    %22 = vector.broadcast %21 : vector<8x1xf32> to vector<8x256xf32>
    %23 = vector.shape_cast %20 : vector<8x1xf32> to vector<8x1xf32>
    %24 = vector.broadcast %23 : vector<8x1xf32> to vector<8x256xf32>
    %25 = arith.select %5, %22, %24 : vector<8x256xi1>, vector<8x256xf32>
    %26 = arith.subf %0, %25 : vector<8x256xf32>
    %27 = math.exp %26 : vector<8x256xf32>
    %c0_7 = arith.constant 0 : index
    %c0_8 = arith.constant 0 : index
    %28 = vector.load %arg2[%c0_7, %c0_8] : memref<256x128xf32, #tpu.memory_space<vmem>>, vector<256x128xf32>
    %cst_9 = arith.constant dense<0.000000e+00> : vector<8x128xf32>
    %29 = tpu.matmul %27, %28, %cst_9 {dimension_numbers = #tpu.dot_dimension_numbers<[1], [0], [0], [1], [0, 0, 1, 1], [], []>, precision = #tpu.contract_precision<fp32>} : vector<8x256xf32>, vector<256x128xf32>, vector<8x128xf32> -> vector<8x128xf32>
    %30 = vector.extract_strided_slice %29 {offsets = [0, 0], sizes = [8, 1], strides = [1, 1]} : vector<8x128xf32> to vector<8x1xf32>
    %31 = vector.extract_strided_slice %29 {offsets = [0, 1], sizes = [8, 1], strides = [1, 1]} : vector<8x128xf32> to vector<8x1xf32>
    %32 = math.log %30 : vector<8x1xf32>
    %33 = arith.addf %16, %32 : vector<8x1xf32>
    %34 = math.log %31 : vector<8x1xf32>
    %35 = arith.addf %20, %34 : vector<8x1xf32>
    %c2_i32 = arith.constant 2 : i32
    %36 = vector.broadcast %c2_i32 : i32 to vector<8x1xi32>
    %37 = arith.muli %36, %11 : vector<8x1xi32>
    %38 = vector.broadcast %37 : vector<8x1xi32> to vector<8x256xi32>
    %39 = arith.cmpi eq, %1, %38 : vector<8x256xi32>
    %c0_i32_10 = arith.constant 0 : i32
    %40 = arith.sitofp %c0_i32_10 : i32 to f32
    %41 = vector.broadcast %40 : f32 to vector<8x256xf32>
    %42 = arith.select %39, %0, %41 : vector<8x256xi1>, vector<8x256xf32>
    %cst_11 = arith.constant dense<0.000000e+00> : vector<8xf32>
    %43 = vector.multi_reduction <add>, %42, %cst_11 [1] : vector<8x256xf32> to vector<8xf32>
    %44 = vector.shape_cast %43 : vector<8xf32> to vector<8x1xf32>
    %c2_i32_12 = arith.constant 2 : i32
    %45 = vector.broadcast %c2_i32_12 : i32 to vector<8x1xi32>
    %46 = arith.muli %45, %12 : vector<8x1xi32>
    %c1_i32_13 = arith.constant 1 : i32
    %47 = vector.broadcast %c1_i32_13 : i32 to vector<8x1xi32>
    %48 = arith.addi %46, %47 : vector<8x1xi32>
    %49 = vector.broadcast %48 : vector<8x1xi32> to vector<8x256xi32>
    %50 = arith.cmpi eq, %1, %49 : vector<8x256xi32>
    %c0_i32_14 = arith.constant 0 : i32
    %51 = arith.sitofp %c0_i32_14 : i32 to f32
    %52 = vector.broadcast %51 : f32 to vector<8x256xf32>
    %53 = arith.select %50, %0, %52 : vector<8x256xi1>, vector<8x256xf32>
    %cst_15 = arith.constant dense<0.000000e+00> : vector<8xf32>
    %54 = vector.multi_reduction <add>, %53, %cst_15 [1] : vector<8x256xf32> to vector<8xf32>
    %55 = vector.shape_cast %54 : vector<8xf32> to vector<8x1xf32>
    %56 = arith.subf %33, %44 : vector<8x1xf32>
    %57 = arith.subf %35, %55 : vector<8x1xf32>
    %58 = tpu.iota {dimensions = array<i32: 0>} : vector<8x1xi32>
    %c8_i32 = arith.constant 8 : i32
    %59 = arith.muli %arg0, %c8_i32 : i32
    %60 = vector.broadcast %59 : i32 to vector<8x1xi32>
    %61 = arith.addi %58, %60 : vector<8x1xi32>
    %c8_i32_16 = arith.constant 8 : i32
    %62 = vector.broadcast %c8_i32_16 : i32 to vector<8x1xi32>
    %63 = arith.cmpi slt, %61, %62 : vector<8x1xi32>
    %c128_i32_17 = arith.constant 128 : i32
    %64 = vector.broadcast %c128_i32_17 : i32 to vector<8x1xi32>
    %65 = arith.cmpi ne, %11, %64 : vector<8x1xi32>
    %66 = arith.andi %63, %65 : vector<8x1xi1>
    %c128_i32_18 = arith.constant 128 : i32
    %67 = vector.broadcast %c128_i32_18 : i32 to vector<8x1xi32>
    %68 = arith.cmpi ne, %12, %67 : vector<8x1xi32>
    %69 = arith.andi %63, %68 : vector<8x1xi1>
    %cst_19 = arith.constant 0.000000e+00 : f32
    %70 = vector.broadcast %cst_19 : f32 to vector<8x1xf32>
    %71 = arith.select %66, %56, %70 : vector<8x1xi1>, vector<8x1xf32>
    %cst_20 = arith.constant dense<0.000000e+00> : vector<1xf32>
    %72 = vector.multi_reduction <add>, %71, %cst_20 [0] : vector<8x1xf32> to vector<1xf32>
    %73 = vector.shape_cast %72 : vector<1xf32> to vector<1x1xf32>
    %cst_21 = arith.constant 0.000000e+00 : f32
    %74 = vector.broadcast %cst_21 : f32 to vector<8x1xf32>
    %75 = arith.select %69, %57, %74 : vector<8x1xi1>, vector<8x1xf32>
    %cst_22 = arith.constant dense<0.000000e+00> : vector<1xf32>
    %76 = vector.multi_reduction <add>, %75, %cst_22 [0] : vector<8x1xf32> to vector<1xf32>
    %77 = vector.shape_cast %76 : vector<1xf32> to vector<1x1xf32>
    %78 = arith.extui %66 : vector<8x1xi1> to vector<8x1xi32>
    %79 = arith.sitofp %78 : vector<8x1xi32> to vector<8x1xf32>
    %cst_23 = arith.constant dense<0.000000e+00> : vector<1xf32>
    %80 = vector.multi_reduction <add>, %79, %cst_23 [0] : vector<8x1xf32> to vector<1xf32>
    %81 = vector.shape_cast %80 : vector<1xf32> to vector<1x1xf32>
    %82 = arith.extui %69 : vector<8x1xi1> to vector<8x1xi32>
    %83 = arith.sitofp %82 : vector<8x1xi32> to vector<8x1xf32>
    %cst_24 = arith.constant dense<0.000000e+00> : vector<1xf32>
    %84 = vector.multi_reduction <add>, %83, %cst_24 [0] : vector<8x1xf32> to vector<1xf32>
    %85 = vector.shape_cast %84 : vector<1xf32> to vector<1x1xf32>
    %86 = tpu.iota {dimensions = array<i32: 1>} : vector<8x128xi32>
    %c0_i32_25 = arith.constant 0 : i32
    %87 = vector.broadcast %c0_i32_25 : i32 to vector<8x128xi32>
    %88 = arith.cmpi eq, %86, %87 : vector<8x128xi32>
    %cst_26 = arith.constant 0.000000e+00 : f32
    %89 = vector.shape_cast %73 : vector<1x1xf32> to vector<1x1xf32>
    %90 = vector.broadcast %89 : vector<1x1xf32> to vector<8x128xf32>
    %91 = vector.broadcast %cst_26 : f32 to vector<8x128xf32>
    %92 = arith.select %88, %90, %91 : vector<8x128xi1>, vector<8x128xf32>
    %c1_i32_27 = arith.constant 1 : i32
    %93 = vector.broadcast %c1_i32_27 : i32 to vector<8x128xi32>
    %94 = arith.cmpi eq, %86, %93 : vector<8x128xi32>
    %cst_28 = arith.constant 0.000000e+00 : f32
    %95 = vector.shape_cast %77 : vector<1x1xf32> to vector<1x1xf32>
    %96 = vector.broadcast %95 : vector<1x1xf32> to vector<8x128xf32>
    %97 = vector.broadcast %cst_28 : f32 to vector<8x128xf32>
    %98 = arith.select %94, %96, %97 : vector<8x128xi1>, vector<8x128xf32>
    %99 = arith.addf %92, %98 : vector<8x128xf32>
    %c2_i32_29 = arith.constant 2 : i32
    %100 = vector.broadcast %c2_i32_29 : i32 to vector<8x128xi32>
    %101 = arith.cmpi eq, %86, %100 : vector<8x128xi32>
    %cst_30 = arith.constant 0.000000e+00 : f32
    %102 = vector.shape_cast %81 : vector<1x1xf32> to vector<1x1xf32>
    %103 = vector.broadcast %102 : vector<1x1xf32> to vector<8x128xf32>
    %104 = vector.broadcast %cst_30 : f32 to vector<8x128xf32>
    %105 = arith.select %101, %103, %104 : vector<8x128xi1>, vector<8x128xf32>
    %106 = arith.addf %99, %105 : vector<8x128xf32>
    %c3_i32 = arith.constant 3 : i32
    %107 = vector.broadcast %c3_i32 : i32 to vector<8x128xi32>
    %108 = arith.cmpi eq, %86, %107 : vector<8x128xi32>
    %cst_31 = arith.constant 0.000000e+00 : f32
    %109 = vector.shape_cast %85 : vector<1x1xf32> to vector<1x1xf32>
    %110 = vector.broadcast %109 : vector<1x1xf32> to vector<8x128xf32>
    %111 = vector.broadcast %cst_31 : f32 to vector<8x128xf32>
    %112 = arith.select %108, %110, %111 : vector<8x128xi1>, vector<8x128xf32>
    %113 = arith.addf %106, %112 : vector<8x128xf32>
    %c0_32 = arith.constant 0 : index
    %c0_33 = arith.constant 0 : index
    %c0_34 = arith.constant 0 : index
    %114 = vector.load %arg4[%c0_32, %c0_33, %c0_34] : memref<1x8x128xf32, #tpu.memory_space<vmem>>, vector<1x8x128xf32>
    %115 = vector.shape_cast %114 : vector<1x8x128xf32> to vector<8x128xf32>
    %116 = vector.shape_cast %113 : vector<8x128xf32> to vector<1x8x128xf32>
    tpu.vector_store %arg4[%c0_32, %c0_33, %c0_34], %116 {strides = array<i32>} : memref<1x8x128xf32, #tpu.memory_space<vmem>>, vector<1x8x128xf32>,
    return
  }
  func.func @transform_0(%arg0: i32) -> (i32, i32) {
    %c0_i32 = arith.constant 0 : i32
    %c0_i32_0 = arith.constant 0 : i32
    return %arg0, %c0_i32 : i32, i32
  }
  func.func @transform_1(%arg0: i32) -> (i32, i32) {
    %c0_i32 = arith.constant 0 : i32
    %c0_i32_0 = arith.constant 0 : i32
    %c0_i32_1 = arith.constant 0 : i32
    return %c0_i32, %c0_i32_0 : i32, i32
  }
  func.func @transform_2(%arg0: i32) -> (i32, i32) {
    %c0_i32 = arith.constant 0 : i32
    %c0_i32_0 = arith.constant 0 : i32
    return %arg0, %c0_i32 : i32, i32
  }
  func.func @transform_3(%arg0: i32) -> (i32, i32, i32) {
    %c0_i32 = arith.constant 0 : i32
    %c0_i32_0 = arith.constant 0 : i32
    %c0_i32_1 = arith.constant 0 : i32
    return %arg0, %c0_i32, %c0_i32_0 : i32, i32, i32
  }
}

</mosaic_0001>

<llo_original>
// kernel: cross_entropy_qa_loss.1
$region0: #{cross_entropy_qa_loss.1}
  #allocation0 [shape = 'u32[]', space=smem, size = 0x4, offset = 0x4, fixed_abs, tag = 'smem constant byte address 0x4 - core index']
  #allocation1 [shape = 'u32[144,128]{1,0:T(1,128)}', space=vmem, size = 0x12000, scoped, tag = 'internal scratch']
  %s0 = inlined_call_operand.vmem [shape: f32[8,256], index: 0, kind: input, shape index: {}]
  %s1 = inlined_call_operand.vmem [shape: f32[256,128], index: 1, kind: input, shape index: {}]
  %s2 = inlined_call_operand.vmem [shape: s32[8,2], index: 2, kind: input, shape index: {}]
  %s3 = inlined_call_operand.vmem [shape: f32[1,8,128], index: 3, kind: output, shape index: {}]
  %s4 = sld [smem:[#allocation0]]
  $region22: #{cross_entropy_qa_loss.1} parent=0
    _
  %s6 = ssub.s32 1, %s4
  %s7 = scalar_select 0, %s6, %s4
  // Predicated region
  $region2: #{cross_entropy_qa_loss.1} parent=0 // pred_check
    _
  $region3: #{cross_entropy_qa_loss.1} parent=0 // pred_check_branch
    %9 = sbr.rel (0) target = $region5
  $region4: #{cross_entropy_qa_loss.1} parent=0 // pred_region
    _
  $region5: #{cross_entropy_qa_loss.1} parent=0 // pred_fallthru
    _
  // Predicated region
  $region6: #{cross_entropy_qa_loss.1} parent=0 // pred_check
    _
  $region7: #{cross_entropy_qa_loss.1} parent=0 // pred_check_branch
    %11 = sbr.rel (0) target = $region9
  $region8: #{cross_entropy_qa_loss.1} parent=0 // pred_region
    _
  $region9: #{cross_entropy_qa_loss.1} parent=0 // pred_fallthru
    _
  // Predicated region
  $region10: #{cross_entropy_qa_loss.1} parent=0 // pred_check
    _
  $region11: #{cross_entropy_qa_loss.1} parent=0 // pred_check_branch
    %13 = sbr.rel (0) target = $region13
  $region12: #{cross_entropy_qa_loss.1} parent=0 // pred_region
    _
  $region13: #{cross_entropy_qa_loss.1} parent=0 // pred_fallthru
    _
  %v14 = vld [vmem:[%s0] sm:$0xff]
  %v15 = vld [vmem:[%s0 + $0x8] sm:$0xff]
  %v16 = vlaneseq
  %v17 = vand.u32 %v16, 127
  %v18 = vadd.s32 %v17, 128
  %v19 = vand.u32 %v17, 1
  %v20 = vand.u32 %v18, 1
  %vm21 = vcmp.eq.s32.totalorder %v19, 0
  %vm22 = vcmp.eq.s32.totalorder %v20, 0
  %v23 = vld [vmem:[%s2] sm:$0xff]
  %vm24 = vcmp.gt.s32.totalorder %v23, 0
  %v25 = vsel %vm24, %v23, 0
  %vm26 = vcmp.lt.s32.totalorder %v25, 128
  %v27 = vsel %vm26, %v25, 128
  %v28 = vsel %vm21, %v14, -inf
  %v29 = vsel %vm22, %v15, -inf
  %v30 = vmax.f32 %v28, %v29
  %31 = vmax.xlane.f32.xlu0 %v30
  %v32 = vpop.xlane.xlu0 %31
  %v33 = vsel %vm21, -inf, %v14
  %v34 = vsel %vm22, -inf, %v15
  %v35 = vmax.f32 %v33, %v34
  %36 = vmax.xlane.f32.xlu0 %v35
  %v37 = vpop.xlane.xlu0 %36
  %v38 = vsel %vm21, %v32, %v37
  %v39 = vsel %vm22, %v32, %v37
  %v40 = vsub.f32 %v14, %v38
  %v41 = vsub.f32 %v15, %v39
  %v42 = vmul.f32 %v40, 1.442695
  %v43 = vpow.pop %v42
  %v44 = vmul.f32 %v41, 1.442695
  %v45 = vpow.pop %v44
  %v46 = vld [vmem:[%s1] sm:$0xff]
  %v47 = vld [vmem:[%s1 + $0x8] sm:$0xff]
  %v48 = vld [vmem:[%s1 + $0x10] sm:$0xff]
  %v49 = vld [vmem:[%s1 + $0x18] sm:$0xff]
  %v50 = vld [vmem:[%s1 + $0x20] sm:$0xff]
  %v51 = vld [vmem:[%s1 + $0x28] sm:$0xff]
  %v52 = vld [vmem:[%s1 + $0x30] sm:$0xff]
  %v53 = vld [vmem:[%s1 + $0x38] sm:$0xff]
  %v54 = vld [vmem:[%s1 + $0x40] sm:$0xff]
  %v55 = vld [vmem:[%s1 + $0x48] sm:$0xff]
  %v56 = vld [vmem:[%s1 + $0x50] sm:$0xff]
  %v57 = vld [vmem:[%s1 + $0x58] sm:$0xff]
  %v58 = vld [vmem:[%s1 + $0x60] sm:$0xff]
  %v59 = vld [vmem:[%s1 + $0x68] sm:$0xff]
  %v60 = vld [vmem:[%s1 + $0x70] sm:$0xff]
  %v61 = vld [vmem:[%s1 + $0x78] sm:$0xff]
  %v62 = vld [vmem:[%s1 + $0x80] sm:$0xff]
  %v63 = vld [vmem:[%s1 + $0x88] sm:$0xff]
  %v64 = vld [vmem:[%s1 + $0x90] sm:$0xff]
  %v65 = vld [vmem:[%s1 + $0x98] sm:$0xff]
  %v66 = vld [vmem:[%s1 + $0xa0] sm:$0xff]
  %v67 = vld [vmem:[%s1 + $0xa8] sm:$0xff]
  %v68 = vld [vmem:[%s1 + $0xb0] sm:$0xff]
  %v69 = vld [vmem:[%s1 + $0xb8] sm:$0xff]
  %v70 = vld [vmem:[%s1 + $0xc0] sm:$0xff]
  %v71 = vld [vmem:[%s1 + $0xc8] sm:$0xff]
  %v72 = vld [vmem:[%s1 + $0xd0] sm:$0xff]
  %v73 = vld [vmem:[%s1 + $0xd8] sm:$0xff]
  %v74 = vld [vmem:[%s1 + $0xe0] sm:$0xff]
  %v75 = vld [vmem:[%s1 + $0xe8] sm:$0xff]
  %v76 = vld [vmem:[%s1 + $0xf0] sm:$0xff]
  %v77 = vld [vmem:[%s1 + $0xf8] sm:$0xff]
  %78 = vmatprep.subr.mxu0 0.0
  %v79 = vand.u32 %v46, 4294901760
  %80 = vmatpush1.msra.mxu0 %v79
  %81 = vmatprep.subr.mxu0 0.0
  %v82 = vand.u32 %v47, 4294901760
  %83 = vmatpush1.msra.mxu0 %v82
  %84 = vmatprep.subr.mxu0 0.0
  %v85 = vand.u32 %v48, 4294901760
  %86 = vmatpush1.msra.mxu0 %v85
  %87 = vmatprep.subr.mxu0 0.0
  %v88 = vand.u32 %v49, 4294901760
  %89 = vmatpush1.msra.mxu0 %v88
  %90 = vmatprep.subr.mxu0 0.0
  %v91 = vand.u32 %v50, 4294901760
  %92 = vmatpush1.msra.mxu0 %v91
  %93 = vmatprep.subr.mxu0 0.0
  %v94 = vand.u32 %v51, 4294901760
  %95 = vmatpush1.msra.mxu0 %v94
  %96 = vmatprep.subr.mxu0 0.0
  %v97 = vand.u32 %v52, 4294901760
  %98 = vmatpush1.msra.mxu0 %v97
  %99 = vmatprep.subr.mxu0 0.0
  %v100 = vand.u32 %v53, 4294901760
  %101 = vmatpush1.msra.mxu0 %v100
  %102 = vmatprep.subr.mxu0 0.0
  %v103 = vand.u32 %v54, 4294901760
  %104 = vmatpush1.msra.mxu0 %v103
  %105 = vmatprep.subr.mxu0 0.0
  %v106 = vand.u32 %v55, 4294901760
  %107 = vmatpush1.msra.mxu0 %v106
  %108 = vmatprep.subr.mxu0 0.0
  %v109 = vand.u32 %v56, 4294901760
  %110 = vmatpush1.msra.mxu0 %v109
  %111 = vmatprep.subr.mxu0 0.0
  %v112 = vand.u32 %v57, 4294901760
  %113 = vmatpush1.msra.mxu0 %v112
  %114 = vmatprep.subr.mxu0 0.0
  %v115 = vand.u32 %v58, 4294901760
  %116 = vmatpush1.msra.mxu0 %v115
  %117 = vmatprep.subr.mxu0 0.0
  %v118 = vand.u32 %v59, 4294901760
  %119 = vmatpush1.msra.mxu0 %v118
  %120 = vmatprep.subr.mxu0 0.0
  %v121 = vand.u32 %v60, 4294901760
  %122 = vmatpush1.msra.mxu0 %v121
  %123 = vmatprep.subr.mxu0 0.0
  %v124 = vand.u32 %v61, 4294901760
  %125 = vmatpush1.msra.mxu0 %v124
  %126 = vmatprep.subr.mxu0 0.0
  %v127 = vand.u32 %v62, 4294901760
  %128 = vmatpush1.msra.mxu0 %v127
  %129 = vmatprep.subr.mxu0 0.0
  %v130 = vand.u32 %v63, 4294901760
  %131 = vmatpush1.msra.mxu0 %v130
  %132 = vmatprep.subr.mxu0 0.0
  %v133 = vand.u32 %v64, 4294901760
  %134 = vmatpush1.msra.mxu0 %v133
  %135 = vmatprep.subr.mxu0 0.0
  %v136 = vand.u32 %v65, 4294901760
  %137 = vmatpush1.msra.mxu0 %v136
  %138 = vmatprep.subr.mxu0 0.0
  %v139 = vand.u32 %v66, 4294901760
  %140 = vmatpush1.msra.mxu0 %v139
  %141 = vmatprep.subr.mxu0 0.0
  %v142 = vand.u32 %v67, 4294901760
  %143 = vmatpush1.msra.mxu0 %v142
  %144 = vmatprep.subr.mxu0 0.0
  %v145 = vand.u32 %v68, 4294901760
  %146 = vmatpush1.msra.mxu0 %v145
  %147 = vmatprep.subr.mxu0 0.0
  %v148 = vand.u32 %v69, 4294901760
  %149 = vmatpush1.msra.mxu0 %v148
  %150 = vmatprep.subr.mxu0 0.0
  %v151 = vand.u32 %v70, 4294901760
  %152 = vmatpush1.msra.mxu0 %v151
  %153 = vmatprep.subr.mxu0 0.0
  %v154 = vand.u32 %v71, 4294901760
  %155 = vmatpush1.msra.mxu0 %v154
  %156 = vmatprep.subr.mxu0 0.0
  %v157 = vand.u32 %v72, 4294901760
  %158 = vmatpush1.msra.mxu0 %v157
  %159 = vmatprep.subr.mxu0 0.0
  %v160 = vand.u32 %v73, 4294901760
  %161 = vmatpush1.msra.mxu0 %v160
  %162 = vmatprep.subr.mxu0 0.0
  %v163 = vand.u32 %v74, 4294901760
  %164 = vmatpush1.msra.mxu0 %v163
  %165 = vmatprep.subr.mxu0 0.0
  %v166 = vand.u32 %v75, 4294901760
  %167 = vmatpush1.msra.mxu0 %v166
  %168 = vmatprep.subr.mxu0 0.0
  %v169 = vand.u32 %v76, 4294901760
  %170 = vmatpush1.msra.mxu0 %v169
  %171 = vmatprep.subr.mxu0 0.0
  %v172 = vand.u32 %v77, 4294901760
  %173 = vmatpush1.msra.mxu0 %v172
  %v174 = vand.u32 %v45, 4294901760
  %v175 = vsub.f32 %v45, %v174
  %v176 = vand.u32 %v175, 4294901760
  %v177 = vsub.f32 %v175, %v176
  %v178 = vand.u32 %v177, 4294901760
  %179 = vmatprep.mubr.f32.mxu0 %v178
  %v180 = vand.u32 %v43, 4294901760
  %v181 = vsub.f32 %v43, %v180
  %v182 = vand.u32 %v181, 4294901760
  %v183 = vsub.f32 %v181, %v182
  %v184 = vand.u32 %v183, 4294901760
  %185 = vmatmul.mubr.f32.gmra.mrb[0].mxu0 %v184
  %v186 = vpop.f32.mrb[0].mxu0
  %v187 = vadd.f32 0.0, %v186
  %v188 = vpop.f32.mrb[0].mxu0
  %189 = vdwg.mxu0
  %190 = vmatprep.subr.mxu0 0.0
  %v191 = vand.u32 %v46, 4294901760
  %v192 = vsub.f32 %v46, %v191
  %v193 = vand.u32 %v192, 4294901760
  %v194 = vsub.f32 %v192, %v193
  %v195 = vand.u32 %v194, 4294901760
  %196 = vmatpush1.msra.mxu0 %v195
  %197 = vmatprep.subr.mxu0 0.0
  %v198 = vand.u32 %v47, 4294901760
  %v199 = vsub.f32 %v47, %v198
  %v200 = vand.u32 %v199, 4294901760
  %v201 = vsub.f32 %v199, %v200
  %v202 = vand.u32 %v201, 4294901760
  %203 = vmatpush1.msra.mxu0 %v202
  %204 = vmatprep.subr.mxu0 0.0
  %v205 = vand.u32 %v48, 4294901760
  %v206 = vsub.f32 %v48, %v205
  %v207 = vand.u32 %v206, 4294901760
  %v208 = vsub.f32 %v206, %v207
  %v209 = vand.u32 %v208, 4294901760
  %210 = vmatpush1.msra.mxu0 %v209
  %211 = vmatprep.subr.mxu0 0.0
  %v212 = vand.u32 %v49, 4294901760
  %v213 = vsub.f32 %v49, %v212
  %v214 = vand.u32 %v213, 4294901760
  %v215 = vsub.f32 %v213, %v214
  %v216 = vand.u32 %v215, 4294901760
  %217 = vmatpush1.msra.mxu0 %v216
  %218 = vmatprep.subr.mxu0 0.0
  %v219 = vand.u32 %v50, 4294901760
  %v220 = vsub.f32 %v50, %v219
  %v221 = vand.u32 %v220, 4294901760
  %v222 = vsub.f32 %v220, %v221
  %v223 = vand.u32 %v222, 4294901760
  %224 = vmatpush1.msra.mxu0 %v223
  %225 = vmatprep.subr.mxu0 0.0
  %v226 = vand.u32 %v51, 4294901760
  %v227 = vsub.f32 %v51, %v226
  %v228 = vand.u32 %v227, 4294901760
  %v229 = vsub.f32 %v227, %v228
  %v230 = vand.u32 %v229, 4294901760
  %231 = vmatpush1.msra.mxu0 %v230
  %232 = vmatprep.subr.mxu0 0.0
  %v233 = vand.u32 %v52, 4294901760
  %v234 = vsub.f32 %v52, %v233
  %v235 = vand.u32 %v234, 4294901760
  %v236 = vsub.f32 %v234, %v235
  %v237 = vand.u32 %v236, 4294901760
  %238 = vmatpush1.msra.mxu0 %v237
  %239 = vmatprep.subr.mxu0 0.0
  %v240 = vand.u32 %v53, 4294901760
  %v241 = vsub.f32 %v53, %v240
  %v242 = vand.u32 %v241, 4294901760
  %v243 = vsub.f32 %v241, %v242
  %v244 = vand.u32 %v243, 4294901760
  %245 = vmatpush1.msra.mxu0 %v244
  %246 = vmatprep.subr.mxu0 0.0
  %v247 = vand.u32 %v54, 4294901760
  %v248 = vsub.f32 %v54, %v247
  %v249 = vand.u32 %v248, 4294901760
  %v250 = vsub.f32 %v248, %v249
  %v251 = vand.u32 %v250, 4294901760
  %252 = vmatpush1.msra.mxu0 %v251
  %253 = vmatprep.subr.mxu0 0.0
  %v254 = vand.u32 %v55, 4294901760
  %v255 = vsub.f32 %v55, %v254
  %v256 = vand.u32 %v255, 4294901760
  %v257 = vsub.f32 %v255, %v256
  %v258 = vand.u32 %v257, 4294901760
  %259 = vmatpush1.msra.mxu0 %v258
  %260 = vmatprep.subr.mxu0 0.0
  %v261 = vand.u32 %v56, 4294901760
  %v262 = vsub.f32 %v56, %v261
  %v263 = vand.u32 %v262, 4294901760
  %v264 = vsub.f32 %v262, %v263
  %v265 = vand.u32 %v264, 4294901760
  %266 = vmatpush1.msra.mxu0 %v265
  %267 = vmatprep.subr.mxu0 0.0
  %v268 = vand.u32 %v57, 4294901760
  %v269 = vsub.f32 %v57, %v268
  %v270 = vand.u32 %v269, 4294901760
  %v271 = vsub.f32 %v269, %v270
  %v272 = vand.u32 %v271, 4294901760
  %273 = vmatpush1.msra.mxu0 %v272
  %274 = vmatprep.subr.mxu0 0.0
  %v275 = vand.u32 %v58, 4294901760
  %v276 = vsub.f32 %v58, %v275
  %v277 = vand.u32 %v276, 4294901760
  %v278 = vsub.f32 %v276, %v277
  %v279 = vand.u32 %v278, 4294901760
  %280 = vmatpush1.msra.mxu0 %v279
  %281 = vmatprep.subr.mxu0 0.0
  %v282 = vand.u32 %v59, 4294901760
  %v283 = vsub.f32 %v59, %v282
  %v284 = vand.u32 %v283, 4294901760
  %v285 = vsub.f32 %v283, %v284
  %v286 = vand.u32 %v285, 4294901760
  %287 = vmatpush1.msra.mxu0 %v286
  %288 = vmatprep.subr.mxu0 0.0
  %v289 = vand.u32 %v60, 4294901760
  %v290 = vsub.f32 %v60, %v289
  %v291 = vand.u32 %v290, 4294901760
  %v292 = vsub.f32 %v290, %v291
  %v293 = vand.u32 %v292, 4294901760
  %294 = vmatpush1.msra.mxu0 %v293
  %295 = vmatprep.subr.mxu0 0.0
  %v296 = vand.u32 %v61, 4294901760
  %v297 = vsub.f32 %v61, %v296
  %v298 = vand.u32 %v297, 4294901760
  %v299 = vsub.f32 %v297, %v298
  %v300 = vand.u32 %v299, 4294901760
  %301 = vmatpush1.msra.mxu0 %v300
  %302 = vmatprep.subr.mxu0 0.0
  %v303 = vand.u32 %v62, 4294901760
  %v304 = vsub.f32 %v62, %v303
  %v305 = vand.u32 %v304, 4294901760
  %v306 = vsub.f32 %v304, %v305
  %v307 = vand.u32 %v306, 4294901760
  %308 = vmatpush1.msra.mxu0 %v307
  %309 = vmatprep.subr.mxu0 0.0
  %v310 = vand.u32 %v63, 4294901760
  %v311 = vsub.f32 %v63, %v310
  %v312 = vand.u32 %v311, 4294901760
  %v313 = vsub.f32 %v311, %v312
  %v314 = vand.u32 %v313, 4294901760
  %315 = vmatpush1.msra.mxu0 %v314
  %316 = vmatprep.subr.mxu0 0.0
  %v317 = vand.u32 %v64, 4294901760
  %v318 = vsub.f32 %v64, %v317
  %v319 = vand.u32 %v318, 4294901760
  %v320 = vsub.f32 %v318, %v319
  %v321 = vand.u32 %v320, 4294901760
  %322 = vmatpush1.msra.mxu0 %v321
  %323 = vmatprep.subr.mxu0 0.0
  %v324 = vand.u32 %v65, 4294901760
  %v325 = vsub.f32 %v65, %v324
  %v326 = vand.u32 %v325, 4294901760
  %v327 = vsub.f32 %v325, %v326
  %v328 = vand.u32 %v327, 4294901760
  %329 = vmatpush1.msra.mxu0 %v328
  %330 = vmatprep.subr.mxu0 0.0
  %v331 = vand.u32 %v66, 4294901760
  %v332 = vsub.f32 %v66, %v331
  %v333 = vand.u32 %v332, 4294901760
  %v334 = vsub.f32 %v332, %v333
  %v335 = vand.u32 %v334, 4294901760
  %336 = vmatpush1.msra.mxu0 %v335
  %337 = vmatprep.subr.mxu0 0.0
  %v338 = vand.u32 %v67, 4294901760
  %v339 = vsub.f32 %v67, %v338
  %v340 = vand.u32 %v339, 4294901760
  %v341 = vsub.f32 %v339, %v340
  %v342 = vand.u32 %v341, 4294901760
  %343 = vmatpush1.msra.mxu0 %v342
  %344 = vmatprep.subr.mxu0 0.0
  %v345 = vand.u32 %v68, 4294901760
  %v346 = vsub.f32 %v68, %v345
  %v347 = vand.u32 %v346, 4294901760
  %v348 = vsub.f32 %v346, %v347
  %v349 = vand.u32 %v348, 4294901760
  %350 = vmatpush1.msra.mxu0 %v349
  %351 = vmatprep.subr.mxu0 0.0
  %v352 = vand.u32 %v69, 4294901760
  %v353 = vsub.f32 %v69, %v352
  %v354 = vand.u32 %v353, 4294901760
  %v355 = vsub.f32 %v353, %v354
  %v356 = vand.u32 %v355, 4294901760
  %357 = vmatpush1.msra.mxu0 %v356
  %358 = vmatprep.subr.mxu0 0.0
  %v359 = vand.u32 %v70, 4294901760
  %v360 = vsub.f32 %v70, %v359
  %v361 = vand.u32 %v360, 4294901760
  %v362 = vsub.f32 %v360, %v361
  %v363 = vand.u32 %v362, 4294901760
  %364 = vmatpush1.msra.mxu0 %v363
  %365 = vmatprep.subr.mxu0 0.0
  %v366 = vand.u32 %v71, 4294901760
  %v367 = vsub.f32 %v71, %v366
  %v368 = vand.u32 %v367, 4294901760
  %v369 = vsub.f32 %v367, %v368
  %v370 = vand.u32 %v369, 4294901760
  %371 = vmatpush1.msra.mxu0 %v370
  %372 = vmatprep.subr.mxu0 0.0
  %v373 = vand.u32 %v72, 4294901760
  %v374 = vsub.f32 %v72, %v373
  %v375 = vand.u32 %v374, 4294901760
  %v376 = vsub.f32 %v374, %v375
  %v377 = vand.u32 %v376, 4294901760
  %378 = vmatpush1.msra.mxu0 %v377
  %379 = vmatprep.subr.mxu0 0.0
  %v380 = vand.u32 %v73, 4294901760
  %v381 = vsub.f32 %v73, %v380
  %v382 = vand.u32 %v381, 4294901760
  %v383 = vsub.f32 %v381, %v382
  %v384 = vand.u32 %v383, 4294901760
  %385 = vmatpush1.msra.mxu0 %v384
  %386 = vmatprep.subr.mxu0 0.0
  %v387 = vand.u32 %v74, 4294901760
  %v388 = vsub.f32 %v74, %v387
  %v389 = vand.u32 %v388, 4294901760
  %v390 = vsub.f32 %v388, %v389
  %v391 = vand.u32 %v390, 4294901760
  %392 = vmatpush1.msra.mxu0 %v391
  %393 = vmatprep.subr.mxu0 0.0
  %v394 = vand.u32 %v75, 4294901760
  %v395 = vsub.f32 %v75, %v394
  %v396 = vand.u32 %v395, 4294901760
  %v397 = vsub.f32 %v395, %v396
  %v398 = vand.u32 %v397, 4294901760
  %399 = vmatpush1.msra.mxu0 %v398
  %400 = vmatprep.subr.mxu0 0.0
  %v401 = vand.u32 %v76, 4294901760
  %v402 = vsub.f32 %v76, %v401
  %v403 = vand.u32 %v402, 4294901760
  %v404 = vsub.f32 %v402, %v403
  %v405 = vand.u32 %v404, 4294901760
  %406 = vmatpush1.msra.mxu0 %v405
  %407 = vmatprep.subr.mxu0 0.0
  %v408 = vand.u32 %v77, 4294901760
  %v409 = vsub.f32 %v77, %v408
  %v410 = vand.u32 %v409, 4294901760
  %v411 = vsub.f32 %v409, %v410
  %v412 = vand.u32 %v411, 4294901760
  %413 = vmatpush1.msra.mxu0 %v412
  %v414 = vand.u32 %v45, 4294901760
  %415 = vmatprep.mubr.f32.mxu0 %v414
  %v416 = vand.u32 %v43, 4294901760
  %417 = vmatmul.mubr.f32.gmra.mrb[0].mxu0 %v416
  %v418 = vpop.f32.mrb[0].mxu0
  %v419 = vadd.f32 %v187, %v418
  %v420 = vpop.f32.mrb[0].mxu0
  %421 = vdwg.mxu0
  %422 = vmatprep.subr.mxu0 0.0
  %v423 = vand.u32 %v46, 4294901760
  %v424 = vsub.f32 %v46, %v423
  %425 = vmatpush1.msra.mxu0 %v424
  %426 = vmatprep.subr.mxu0 0.0
  %v427 = vand.u32 %v47, 4294901760
  %v428 = vsub.f32 %v47, %v427
  %429 = vmatpush1.msra.mxu0 %v428
  %430 = vmatprep.subr.mxu0 0.0
  %v431 = vand.u32 %v48, 4294901760
  %v432 = vsub.f32 %v48, %v431
  %433 = vmatpush1.msra.mxu0 %v432
  %434 = vmatprep.subr.mxu0 0.0
  %v435 = vand.u32 %v49, 4294901760
  %v436 = vsub.f32 %v49, %v435
  %437 = vmatpush1.msra.mxu0 %v436
  %438 = vmatprep.subr.mxu0 0.0
  %v439 = vand.u32 %v50, 4294901760
  %v440 = vsub.f32 %v50, %v439
  %441 = vmatpush1.msra.mxu0 %v440
  %442 = vmatprep.subr.mxu0 0.0
  %v443 = vand.u32 %v51, 4294901760
  %v444 = vsub.f32 %v51, %v443
  %445 = vmatpush1.msra.mxu0 %v444
  %446 = vmatprep.subr.mxu0 0.0
  %v447 = vand.u32 %v52, 4294901760
  %v448 = vsub.f32 %v52, %v447
  %449 = vmatpush1.msra.mxu0 %v448
  %450 = vmatprep.subr.mxu0 0.0
  %v451 = vand.u32 %v53, 4294901760
  %v452 = vsub.f32 %v53, %v451
  %453 = vmatpush1.msra.mxu0 %v452
  %454 = vmatprep.subr.mxu0 0.0
  %v455 = vand.u32 %v54, 4294901760
  %v456 = vsub.f32 %v54, %v455
  %457 = vmatpush1.msra.mxu0 %v456
  %458 = vmatprep.subr.mxu0 0.0
  %v459 = vand.u32 %v55, 4294901760
  %v460 = vsub.f32 %v55, %v459
  %461 = vmatpush1.msra.mxu0 %v460
  %462 = vmatprep.subr.mxu0 0.0
  %v463 = vand.u32 %v56, 4294901760
  %v464 = vsub.f32 %v56, %v463
  %465 = vmatpush1.msra.mxu0 %v464
  %466 = vmatprep.subr.mxu0 0.0
  %v467 = vand.u32 %v57, 4294901760
  %v468 = vsub.f32 %v57, %v467
  %469 = vmatpush1.msra.mxu0 %v468
  %470 = vmatprep.subr.mxu0 0.0
  %v471 = vand.u32 %v58, 4294901760
  %v472 = vsub.f32 %v58, %v471
  %473 = vmatpush1.msra.mxu0 %v472
  %474 = vmatprep.subr.mxu0 0.0
  %v475 = vand.u32 %v59, 4294901760
  %v476 = vsub.f32 %v59, %v475
  %477 = vmatpush1.msra.mxu0 %v476
  %478 = vmatprep.subr.mxu0 0.0
  %v479 = vand.u32 %v60, 4294901760
  %v480 = vsub.f32 %v60, %v479
  %481 = vmatpush1.msra.mxu0 %v480
  %482 = vmatprep.subr.mxu0 0.0
  %v483 = vand.u32 %v61, 4294901760
  %v484 = vsub.f32 %v61, %v483
  %485 = vmatpush1.msra.mxu0 %v484
  %486 = vmatprep.subr.mxu0 0.0
  %v487 = vand.u32 %v62, 4294901760
  %v488 = vsub.f32 %v62, %v487
  %489 = vmatpush1.msra.mxu0 %v488
  %490 = vmatprep.subr.mxu0 0.0
  %v491 = vand.u32 %v63, 4294901760
  %v492 = vsub.f32 %v63, %v491
  %493 = vmatpush1.msra.mxu0 %v492
  %494 = vmatprep.subr.mxu0 0.0
  %v495 = vand.u32 %v64, 4294901760
  %v496 = vsub.f32 %v64, %v495
  %497 = vmatpush1.msra.mxu0 %v496
  %498 = vmatprep.subr.mxu0 0.0
  %v499 = vand.u32 %v65, 4294901760
  %v500 = vsub.f32 %v65, %v499
  %501 = vmatpush1.msra.mxu0 %v500
  %502 = vmatprep.subr.mxu0 0.0
  %v503 = vand.u32 %v66, 4294901760
  %v504 = vsub.f32 %v66, %v503
  %505 = vmatpush1.msra.mxu0 %v504
  %506 = vmatprep.subr.mxu0 0.0
  %v507 = vand.u32 %v67, 4294901760
  %v508 = vsub.f32 %v67, %v507
  %509 = vmatpush1.msra.mxu0 %v508
  %510 = vmatprep.subr.mxu0 0.0
  %v511 = vand.u32 %v68, 4294901760
  %v512 = vsub.f32 %v68, %v511
  %513 = vmatpush1.msra.mxu0 %v512
  %514 = vmatprep.subr.mxu0 0.0
  %v515 = vand.u32 %v69, 4294901760
  %v516 = vsub.f32 %v69, %v515
  %517 = vmatpush1.msra.mxu0 %v516
  %518 = vmatprep.subr.mxu0 0.0
  %v519 = vand.u32 %v70, 4294901760
  %v520 = vsub.f32 %v70, %v519
  %521 = vmatpush1.msra.mxu0 %v520
  %522 = vmatprep.subr.mxu0 0.0
  %v523 = vand.u32 %v71, 4294901760
  %v524 = vsub.f32 %v71, %v523
  %525 = vmatpush1.msra.mxu0 %v524
  %526 = vmatprep.subr.mxu0 0.0
  %v527 = vand.u32 %v72, 4294901760
  %v528 = vsub.f32 %v72, %v527
  %529 = vmatpush1.msra.mxu0 %v528
  %530 = vmatprep.subr.mxu0 0.0
  %v531 = vand.u32 %v73, 4294901760
  %v532 = vsub.f32 %v73, %v531
  %533 = vmatpush1.msra.mxu0 %v532
  %534 = vmatprep.subr.mxu0 0.0
  %v535 = vand.u32 %v74, 4294901760
  %v536 = vsub.f32 %v74, %v535
  %537 = vmatpush1.msra.mxu0 %v536
  %538 = vmatprep.subr.mxu0 0.0
  %v539 = vand.u32 %v75, 4294901760
  %v540 = vsub.f32 %v75, %v539
  %541 = vmatpush1.msra.mxu0 %v540
  %542 = vmatprep.subr.mxu0 0.0
  %v543 = vand.u32 %v76, 4294901760
  %v544 = vsub.f32 %v76, %v543
  %545 = vmatpush1.msra.mxu0 %v544
  %546 = vmatprep.subr.mxu0 0.0
  %v547 = vand.u32 %v77, 4294901760
  %v548 = vsub.f32 %v77, %v547
  %549 = vmatpush1.msra.mxu0 %v548
  %v550 = vand.u32 %v45, 4294901760
  %v551 = vsub.f32 %v45, %v550
  %552 = vmatprep.mubr.f32.mxu0 %v551
  %v553 = vand.u32 %v43, 4294901760
  %v554 = vsub.f32 %v43, %v553
  %555 = vmatmul.mubr.f32.gmra.mrb[0].mxu0 %v554
  %v556 = vpop.f32.mrb[0].mxu0
  %v557 = vadd.f32 %v419, %v556
  %v558 = vpop.f32.mrb[0].mxu0
  %559 = vdwg.mxu0
  %560 = vmatprep.subr.mxu0 0.0
  %v561 = vand.u32 %v46, 4294901760
  %562 = vmatpush1.msra.mxu0 %v561
  %563 = vmatprep.subr.mxu0 0.0
  %v564 = vand.u32 %v47, 4294901760
  %565 = vmatpush1.msra.mxu0 %v564
  %566 = vmatprep.subr.mxu0 0.0
  %v567 = vand.u32 %v48, 4294901760
  %568 = vmatpush1.msra.mxu0 %v567
  %569 = vmatprep.subr.mxu0 0.0
  %v570 = vand.u32 %v49, 4294901760
  %571 = vmatpush1.msra.mxu0 %v570
  %572 = vmatprep.subr.mxu0 0.0
  %v573 = vand.u32 %v50, 4294901760
  %574 = vmatpush1.msra.mxu0 %v573
  %575 = vmatprep.subr.mxu0 0.0
  %v576 = vand.u32 %v51, 4294901760
  %577 = vmatpush1.msra.mxu0 %v576
  %578 = vmatprep.subr.mxu0 0.0
  %v579 = vand.u32 %v52, 4294901760
  %580 = vmatpush1.msra.mxu0 %v579
  %581 = vmatprep.subr.mxu0 0.0
  %v582 = vand.u32 %v53, 4294901760
  %583 = vmatpush1.msra.mxu0 %v582
  %584 = vmatprep.subr.mxu0 0.0
  %v585 = vand.u32 %v54, 4294901760
  %586 = vmatpush1.msra.mxu0 %v585
  %587 = vmatprep.subr.mxu0 0.0
  %v588 = vand.u32 %v55, 4294901760
  %589 = vmatpush1.msra.mxu0 %v588
  %590 = vmatprep.subr.mxu0 0.0
  %v591 = vand.u32 %v56, 4294901760
  %592 = vmatpush1.msra.mxu0 %v591
  %593 = vmatprep.subr.mxu0 0.0
  %v594 = vand.u32 %v57, 4294901760
  %595 = vmatpush1.msra.mxu0 %v594
  %596 = vmatprep.subr.mxu0 0.0
  %v597 = vand.u32 %v58, 4294901760
  %598 = vmatpush1.msra.mxu0 %v597
  %599 = vmatprep.subr.mxu0 0.0
  %v600 = vand.u32 %v59, 4294901760
  %601 = vmatpush1.msra.mxu0 %v600
  %602 = vmatprep.subr.mxu0 0.0
  %v603 = vand.u32 %v60, 4294901760
  %604 = vmatpush1.msra.mxu0 %v603
  %605 = vmatprep.subr.mxu0 0.0
  %v606 = vand.u32 %v61, 4294901760
  %607 = vmatpush1.msra.mxu0 %v606
  %608 = vmatprep.subr.mxu0 0.0
  %v609 = vand.u32 %v62, 4294901760
  %610 = vmatpush1.msra.mxu0 %v609
  %611 = vmatprep.subr.mxu0 0.0
  %v612 = vand.u32 %v63, 4294901760
  %613 = vmatpush1.msra.mxu0 %v612
  %614 = vmatprep.subr.mxu0 0.0
  %v615 = vand.u32 %v64, 4294901760
  %616 = vmatpush1.msra.mxu0 %v615
  %617 = vmatprep.subr.mxu0 0.0
  %v618 = vand.u32 %v65, 4294901760
  %619 = vmatpush1.msra.mxu0 %v618
  %620 = vmatprep.subr.mxu0 0.0
  %v621 = vand.u32 %v66, 4294901760
  %622 = vmatpush1.msra.mxu0 %v621
  %623 = vmatprep.subr.mxu0 0.0
  %v624 = vand.u32 %v67, 4294901760
  %625 = vmatpush1.msra.mxu0 %v624
  %626 = vmatprep.subr.mxu0 0.0
  %v627 = vand.u32 %v68, 4294901760
  %628 = vmatpush1.msra.mxu0 %v627
  %629 = vmatprep.subr.mxu0 0.0
  %v630 = vand.u32 %v69, 4294901760
  %631 = vmatpush1.msra.mxu0 %v630
  %632 = vmatprep.subr.mxu0 0.0
  %v633 = vand.u32 %v70, 4294901760
  %634 = vmatpush1.msra.mxu0 %v633
  %635 = vmatprep.subr.mxu0 0.0
  %v636 = vand.u32 %v71, 4294901760
  %637 = vmatpush1.msra.mxu0 %v636
  %638 = vmatprep.subr.mxu0 0.0
  %v639 = vand.u32 %v72, 4294901760
  %640 = vmatpush1.msra.mxu0 %v639
  %641 = vmatprep.subr.mxu0 0.0
  %v642 = vand.u32 %v73, 4294901760
  %643 = vmatpush1.msra.mxu0 %v642
  %644 = vmatprep.subr.mxu0 0.0
  %v645 = vand.u32 %v74, 4294901760
  %646 = vmatpush1.msra.mxu0 %v645
  %647 = vmatprep.subr.mxu0 0.0
  %v648 = vand.u32 %v75, 4294901760
  %649 = vmatpush1.msra.mxu0 %v648
  %650 = vmatprep.subr.mxu0 0.0
  %v651 = vand.u32 %v76, 4294901760
  %652 = vmatpush1.msra.mxu0 %v651
  %653 = vmatprep.subr.mxu0 0.0
  %v654 = vand.u32 %v77, 4294901760
  %655 = vmatpush1.msra.mxu0 %v654
  %v656 = vand.u32 %v45, 4294901760
  %v657 = vsub.f32 %v45, %v656
  %v658 = vand.u32 %v657, 4294901760
  %659 = vmatprep.mubr.f32.mxu0 %v658
  %v660 = vand.u32 %v43, 4294901760
  %v661 = vsub.f32 %v43, %v660
  %v662 = vand.u32 %v661, 4294901760
  %663 = vmatmul.mubr.f32.gmra.mrb[0].mxu0 %v662
  %v664 = vpop.f32.mrb[0].mxu0
  %v665 = vadd.f32 %v557, %v664
  %v666 = vpop.f32.mrb[0].mxu0
  %667 = vdwg.mxu0
  %668 = vmatprep.subr.mxu0 0.0
  %v669 = vand.u32 %v46, 4294901760
  %v670 = vsub.f32 %v46, %v669
  %v671 = vand.u32 %v670, 4294901760
  %672 = vmatpush1.msra.mxu0 %v671
  %673 = vmatprep.subr.mxu0 0.0
  %v674 = vand.u32 %v47, 4294901760
  %v675 = vsub.f32 %v47, %v674
  %v676 = vand.u32 %v675, 4294901760
  %677 = vmatpush1.msra.mxu0 %v676
  %678 = vmatprep.subr.mxu0 0.0
  %v679 = vand.u32 %v48, 4294901760
  %v680 = vsub.f32 %v48, %v679
  %v681 = vand.u32 %v680, 4294901760
  %682 = vmatpush1.msra.mxu0 %v681
  %683 = vmatprep.subr.mxu0 0.0
  %v684 = vand.u32 %v49, 4294901760
  %v685 = vsub.f32 %v49, %v684
  %v686 = vand.u32 %v685, 4294901760
  %687 = vmatpush1.msra.mxu0 %v686
  %688 = vmatprep.subr.mxu0 0.0
  %v689 = vand.u32 %v50, 4294901760
  %v690 = vsub.f32 %v50, %v689
  %v691 = vand.u32 %v690, 4294901760
  %692 = vmatpush1.msra.mxu0 %v691
  %693 = vmatprep.subr.mxu0 0.0
  %v694 = vand.u32 %v51, 4294901760
  %v695 = vsub.f32 %v51, %v694
  %v696 = vand.u32 %v695, 4294901760
  %697 = vmatpush1.msra.mxu0 %v696
  %698 = vmatprep.subr.mxu0 0.0
  %v699 = vand.u32 %v52, 4294901760
  %v700 = vsub.f32 %v52, %v699
  %v701 = vand.u32 %v700, 4294901760
  %702 = vmatpush1.msra.mxu0 %v701
  %703 = vmatprep.subr.mxu0 0.0
  %v704 = vand.u32 %v53, 4294901760
  %v705 = vsub.f32 %v53, %v704
  %v706 = vand.u32 %v705, 4294901760
  %707 = vmatpush1.msra.mxu0 %v706
  %708 = vmatprep.subr.mxu0 0.0
  %v709 = vand.u32 %v54, 4294901760
  %v710 = vsub.f32 %v54, %v709
  %v711 = vand.u32 %v710, 4294901760
  %712 = vmatpush1.msra.mxu0 %v711
  %713 = vmatprep.subr.mxu0 0.0
  %v714 = vand.u32 %v55, 4294901760
  %v715 = vsub.f32 %v55, %v714
  %v716 = vand.u32 %v715, 4294901760
  %717 = vmatpush1.msra.mxu0 %v716
  %718 = vmatprep.subr.mxu0 0.0
  %v719 = vand.u32 %v56, 4294901760
  %v720 = vsub.f32 %v56, %v719
  %v721 = vand.u32 %v720, 4294901760
  %722 = vmatpush1.msra.mxu0 %v721
  %723 = vmatprep.subr.mxu0 0.0
  %v724 = vand.u32 %v57, 4294901760
  %v725 = vsub.f32 %v57, %v724
  %v726 = vand.u32 %v725, 4294901760
  %727 = vmatpush1.msra.mxu0 %v726
  %728 = vmatprep.subr.mxu0 0.0
  %v729 = vand.u32 %v58, 4294901760
  %v730 = vsub.f32 %v58, %v729
  %v731 = vand.u32 %v730, 4294901760
  %732 = vmatpush1.msra.mxu0 %v731
  %733 = vmatprep.subr.mxu0 0.0
  %v734 = vand.u32 %v59, 4294901760
  %v735 = vsub.f32 %v59, %v734
  %v736 = vand.u32 %v735, 4294901760
  %737 = vmatpush1.msra.mxu0 %v736
  %738 = vmatprep.subr.mxu0 0.0
  %v739 = vand.u32 %v60, 4294901760
  %v740 = vsub.f32 %v60, %v739
  %v741 = vand.u32 %v740, 4294901760
  %742 = vmatpush1.msra.mxu0 %v741
  %743 = vmatprep.subr.mxu0 0.0
  %v744 = vand.u32 %v61, 4294901760
  %v745 = vsub.f32 %v61, %v744
  %v746 = vand.u32 %v745, 4294901760
  %747 = vmatpush1.msra.mxu0 %v746
  %748 = vmatprep.subr.mxu0 0.0
  %v749 = vand.u32 %v62, 4294901760
  %v750 = vsub.f32 %v62, %v749
  %v751 = vand.u32 %v750, 4294901760
  %752 = vmatpush1.msra.mxu0 %v751
  %753 = vmatprep.subr.mxu0 0.0
  %v754 = vand.u32 %v63, 4294901760
  %v755 = vsub.f32 %v63, %v754
  %v756 = vand.u32 %v755, 4294901760
  %757 = vmatpush1.msra.mxu0 %v756
  %758 = vmatprep.subr.mxu0 0.0
  %v759 = vand.u32 %v64, 4294901760
  %v760 = vsub.f32 %v64, %v759
  %v761 = vand.u32 %v760, 4294901760
  %762 = vmatpush1.msra.mxu0 %v761
  %763 = vmatprep.subr.mxu0 0.0
  %v764 = vand.u32 %v65, 4294901760
  %v765 = vsub.f32 %v65, %v764
  %v766 = vand.u32 %v765, 4294901760
  %767 = vmatpush1.msra.mxu0 %v766
  %768 = vmatprep.subr.mxu0 0.0
  %v769 = vand.u32 %v66, 4294901760
  %v770 = vsub.f32 %v66, %v769
  %v771 = vand.u32 %v770, 4294901760
  %772 = vmatpush1.msra.mxu0 %v771
  %773 = vmatprep.subr.mxu0 0.0
  %v774 = vand.u32 %v67, 4294901760
  %v775 = vsub.f32 %v67, %v774
  %v776 = vand.u32 %v775, 4294901760
  %777 = vmatpush1.msra.mxu0 %v776
  %778 = vmatprep.subr.mxu0 0.0
  %v779 = vand.u32 %v68, 4294901760
  %v780 = vsub.f32 %v68, %v779
  %v781 = vand.u32 %v780, 4294901760
  %782 = vmatpush1.msra.mxu0 %v781
  %783 = vmatprep.subr.mxu0 0.0
  %v784 = vand.u32 %v69, 4294901760
  %v785 = vsub.f32 %v69, %v784
  %v786 = vand.u32 %v785, 4294901760
  %787 = vmatpush1.msra.mxu0 %v786
  %788 = vmatprep.subr.mxu0 0.0
  %v789 = vand.u32 %v70, 4294901760
  %v790 = vsub.f32 %v70, %v789
  %v791 = vand.u32 %v790, 4294901760
  %792 = vmatpush1.msra.mxu0 %v791
  %793 = vmatprep.subr.mxu0 0.0
  %v794 = vand.u32 %v71, 4294901760
  %v795 = vsub.f32 %v71, %v794
  %v796 = vand.u32 %v795, 4294901760
  %797 = vmatpush1.msra.mxu0 %v796
  %798 = vmatprep.subr.mxu0 0.0
  %v799 = vand.u32 %v72, 4294901760
  %v800 = vsub.f32 %v72, %v799
  %v801 = vand.u32 %v800, 4294901760
  %802 = vmatpush1.msra.mxu0 %v801
  %803 = vmatprep.subr.mxu0 0.0
  %v804 = vand.u32 %v73, 4294901760
  %v805 = vsub.f32 %v73, %v804
  %v806 = vand.u32 %v805, 4294901760
  %807 = vmatpush1.msra.mxu0 %v806
  %808 = vmatprep.subr.mxu0 0.0
  %v809 = vand.u32 %v74, 4294901760
  %v810 = vsub.f32 %v74, %v809
  %v811 = vand.u32 %v810, 4294901760
  %812 = vmatpush1.msra.mxu0 %v811
  %813 = vmatprep.subr.mxu0 0.0
  %v814 = vand.u32 %v75, 4294901760
  %v815 = vsub.f32 %v75, %v814
  %v816 = vand.u32 %v815, 4294901760
  %817 = vmatpush1.msra.mxu0 %v816
  %818 = vmatprep.subr.mxu0 0.0
  %v819 = vand.u32 %v76, 4294901760
  %v820 = vsub.f32 %v76, %v819
  %v821 = vand.u32 %v820, 4294901760
  %822 = vmatpush1.msra.mxu0 %v821
  %823 = vmatprep.subr.mxu0 0.0
  %v824 = vand.u32 %v77, 4294901760
  %v825 = vsub.f32 %v77, %v824
  %v826 = vand.u32 %v825, 4294901760
  %827 = vmatpush1.msra.mxu0 %v826
  %v828 = vand.u32 %v45, 4294901760
  %829 = vmatprep.mubr.f32.mxu0 %v828
  %v830 = vand.u32 %v43, 4294901760
  %831 = vmatmul.mubr.f32.gmra.mrb[0].mxu0 %v830
  %v832 = vpop.f32.mrb[0].mxu0
  %v833 = vadd.f32 %v665, %v832
  %v834 = vpop.f32.mrb[0].mxu0
  %835 = vdwg.mxu0
  %836 = vmatprep.subr.mxu0 0.0
  %v837 = vand.u32 %v46, 4294901760
  %838 = vmatpush1.msra.mxu0 %v837
  %839 = vmatprep.subr.mxu0 0.0
  %v840 = vand.u32 %v47, 4294901760
  %841 = vmatpush1.msra.mxu0 %v840
  %842 = vmatprep.subr.mxu0 0.0
  %v843 = vand.u32 %v48, 4294901760
  %844 = vmatpush1.msra.mxu0 %v843
  %845 = vmatprep.subr.mxu0 0.0
  %v846 = vand.u32 %v49, 4294901760
  %847 = vmatpush1.msra.mxu0 %v846
  %848 = vmatprep.subr.mxu0 0.0
  %v849 = vand.u32 %v50, 4294901760
  %850 = vmatpush1.msra.mxu0 %v849
  %851 = vmatprep.subr.mxu0 0.0
  %v852 = vand.u32 %v51, 4294901760
  %853 = vmatpush1.msra.mxu0 %v852
  %854 = vmatprep.subr.mxu0 0.0
  %v855 = vand.u32 %v52, 4294901760
  %856 = vmatpush1.msra.mxu0 %v855
  %857 = vmatprep.subr.mxu0 0.0
  %v858 = vand.u32 %v53, 4294901760
  %859 = vmatpush1.msra.mxu0 %v858
  %860 = vmatprep.subr.mxu0 0.0
  %v861 = vand.u32 %v54, 4294901760
  %862 = vmatpush1.msra.mxu0 %v861
  %863 = vmatprep.subr.mxu0 0.0
  %v864 = vand.u32 %v55, 4294901760
  %865 = vmatpush1.msra.mxu0 %v864
  %866 = vmatprep.subr.mxu0 0.0
  %v867 = vand.u32 %v56, 4294901760
  %868 = vmatpush1.msra.mxu0 %v867
  %869 = vmatprep.subr.mxu0 0.0
  %v870 = vand.u32 %v57, 4294901760
  %871 = vmatpush1.msra.mxu0 %v870
  %872 = vmatprep.subr.mxu0 0.0
  %v873 = vand.u32 %v58, 4294901760
  %874 = vmatpush1.msra.mxu0 %v873
  %875 = vmatprep.subr.mxu0 0.0
  %v876 = vand.u32 %v59, 4294901760
  %877 = vmatpush1.msra.mxu0 %v876
  %878 = vmatprep.subr.mxu0 0.0
  %v879 = vand.u32 %v60, 4294901760
  %880 = vmatpush1.msra.mxu0 %v879
  %881 = vmatprep.subr.mxu0 0.0
  %v882 = vand.u32 %v61, 4294901760
  %883 = vmatpush1.msra.mxu0 %v882
  %884 = vmatprep.subr.mxu0 0.0
  %v885 = vand.u32 %v62, 4294901760
  %886 = vmatpush1.msra.mxu0 %v885
  %887 = vmatprep.subr.mxu0 0.0
  %v888 = vand.u32 %v63, 4294901760
  %889 = vmatpush1.msra.mxu0 %v888
  %890 = vmatprep.subr.mxu0 0.0
  %v891 = vand.u32 %v64, 4294901760
  %892 = vmatpush1.msra.mxu0 %v891
  %893 = vmatprep.subr.mxu0 0.0
  %v894 = vand.u32 %v65, 4294901760
  %895 = vmatpush1.msra.mxu0 %v894
  %896 = vmatprep.subr.mxu0 0.0
  %v897 = vand.u32 %v66, 4294901760
  %898 = vmatpush1.msra.mxu0 %v897
  %899 = vmatprep.subr.mxu0 0.0
  %v900 = vand.u32 %v67, 4294901760
  %901 = vmatpush1.msra.mxu0 %v900
  %902 = vmatprep.subr.mxu0 0.0
  %v903 = vand.u32 %v68, 4294901760
  %904 = vmatpush1.msra.mxu0 %v903
  %905 = vmatprep.subr.mxu0 0.0
  %v906 = vand.u32 %v69, 4294901760
  %907 = vmatpush1.msra.mxu0 %v906
  %908 = vmatprep.subr.mxu0 0.0
  %v909 = vand.u32 %v70, 4294901760
  %910 = vmatpush1.msra.mxu0 %v909
  %911 = vmatprep.subr.mxu0 0.0
  %v912 = vand.u32 %v71, 4294901760
  %913 = vmatpush1.msra.mxu0 %v912
  %914 = vmatprep.subr.mxu0 0.0
  %v915 = vand.u32 %v72, 4294901760
  %916 = vmatpush1.msra.mxu0 %v915
  %917 = vmatprep.subr.mxu0 0.0
  %v918 = vand.u32 %v73, 4294901760
  %919 = vmatpush1.msra.mxu0 %v918
  %920 = vmatprep.subr.mxu0 0.0
  %v921 = vand.u32 %v74, 4294901760
  %922 = vmatpush1.msra.mxu0 %v921
  %923 = vmatprep.subr.mxu0 0.0
  %v924 = vand.u32 %v75, 4294901760
  %925 = vmatpush1.msra.mxu0 %v924
  %926 = vmatprep.subr.mxu0 0.0
  %v927 = vand.u32 %v76, 4294901760
  %928 = vmatpush1.msra.mxu0 %v927
  %929 = vmatprep.subr.mxu0 0.0
  %v930 = vand.u32 %v77, 4294901760
  %931 = vmatpush1.msra.mxu0 %v930
  %v932 = vand.u32 %v45, 4294901760
  %933 = vmatprep.mubr.f32.mxu0 %v932
  %v934 = vand.u32 %v43, 4294901760
  %935 = vmatmul.mubr.f32.gmra.mrb[0].mxu0 %v934
  %v936 = vpop.f32.mrb[0].mxu0
  %v937 = vadd.f32 %v833, %v936
  %v938 = vpop.f32.mrb[0].mxu0
  %939 = vdwg.mxu0
  %v940 = vlog2.pop %v937
  %v941 = vmul.f32 %v940, 0.6931472
  %v942 = vadd.f32 %v32, %v941
  %v943 = vadd.f32 %v37, %v941
  %v944 = vmul.u32 %v27, 2
  %945 = vset.pattern.permute.xlu0 0
  %946 = vperm.xlu0 %945, %v944
  %v947 = vpop.permute.xlu0 %946
  %vm948 = vcmp.eq.s32.totalorder %v17, %v947
  %vm949 = vcmp.eq.s32.totalorder %v18, %v947
  %v950 = vsel %vm948, %v14, 0.0
  %v951 = vsel %vm949, %v15, 0.0
  %v952 = vadd.f32 %v950, %v951
  %953 = vadd.xlane.f32.xlu0 %v952
  %v954 = vpop.xlane.xlu0 %953
  %v955 = vadd.s32 %v944, 1
  %956 = vset.pattern.permute.xlu0 1
  %957 = vperm.xlu0 %956, %v955
  %v958 = vpop.permute.xlu0 %957
  %vm959 = vcmp.eq.s32.totalorder %v17, %v958
  %vm960 = vcmp.eq.s32.totalorder %v18, %v958
  %v961 = vsel %vm959, %v14, 0.0
  %v962 = vsel %vm960, %v15, 0.0
  %v963 = vadd.f32 %v961, %v962
  %964 = vadd.xlane.f32.xlu0 %v963
  %v965 = vpop.xlane.xlu0 %964
  %v966 = vsub.f32 %v942, %v954
  %v967 = vsub.f32 %v943, %v965
  %v968 = vlaneseq
  %v969 = vshrl.u32 %v968, 7
  %s970 = smul.u32 0, 8
  %v971 = vstv %s970
  %v972 = vadd.s32 %v969, %v971
  %vm973 = vcmp.lt.s32.totalorder %v972, 8
  %vm974 = vcmp.ne.s32.totalorder %v27, 128
  %vm975 = vmand %vm973, %vm974
  %v976 = vsel %vm975, %v966, 0.0
  %vm977 = vcmask 7168
  %v978 = vsel %vm977, %v976, 0.0
  %v979 = vrot.slane %v978, 4
  %v980 = vadd.f32 %v978, %v979
  %v981 = vrot.slane %v980, 2
  %v982 = vadd.f32 %v980, %v981
  %v983 = vrot.slane %v982, 1
  %v984 = vadd.f32 %v982, %v983
  %v985 = vsel %vm975, %v967, 0.0
  %vm986 = vcmask 15368
  %v987 = vsel %vm986, %v985, 0.0
  %v988 = vrot.slane %v987, 4
  %v989 = vadd.f32 %v987, %v988
  %v990 = vrot.slane %v989, 2
  %v991 = vadd.f32 %v989, %v990
  %v992 = vrot.slane %v991, 1
  %v993 = vadd.f32 %v991, %v992
  %v994 = vsel %vm975, 1, 0
  %v995 = vcvt.s32.f32 %v994
  %v996 = vsel %vm977, %v995, 0.0
  %v997 = vrot.slane %v996, 4
  %v998 = vadd.f32 %v996, %v997
  %v999 = vrot.slane %v998, 2
  %v1000 = vadd.f32 %v998, %v999
  %v1001 = vrot.slane %v1000, 1
  %v1002 = vadd.f32 %v1000, %v1001
  %v1003 = vsel %vm986, %v995, 0.0
  %v1004 = vrot.slane %v1003, 4
  %v1005 = vadd.f32 %v1003, %v1004
  %v1006 = vrot.slane %v1005, 2
  %v1007 = vadd.f32 %v1005, %v1006
  %v1008 = vrot.slane %v1007, 1
  %v1009 = vadd.f32 %v1007, %v1008
  %vm1010 = vcmp.eq.s32.totalorder %v17, 0
  %1012 = vset.pattern.permute.xlu0 0
  %1013 = vperm.xlu0 %1012, %v984
  %v1014 = vpop.permute.xlu0 %1013
  %v1016 = vsel %vm1010, %v1014, 0.0
  %vm1017 = vcmp.eq.s32.totalorder %v17, 1
  %1019 = vset.pattern.permute.xlu0 1
  %1020 = vperm.xlu0 %1019, %v993
  %v1021 = vpop.permute.xlu0 %1020
  %v1023 = vsel %vm1017, %v1021, 0.0
  %v1024 = vadd.f32 %v1016, %v1023
  %vm1025 = vcmp.eq.s32.totalorder %v17, 2
  %1027 = vset.pattern.permute.xlu0 0
  %1028 = vperm.xlu0 %1027, %v1002
  %v1029 = vpop.permute.xlu0 %1028
  %v1031 = vsel %vm1025, %v1029, 0.0
  %v1032 = vadd.f32 %v1024, %v1031
  %vm1033 = vcmp.eq.s32.totalorder %v17, 3
  %1035 = vset.pattern.permute.xlu0 1
  %1036 = vperm.xlu0 %1035, %v1009
  %v1037 = vpop.permute.xlu0 %1036
  %v1039 = vsel %vm1033, %v1037, 0.0
  %v1040 = vadd.f32 %v1032, %v1039
  %1041 = vst [vmem:[%s3] sm:$0xff] %v1040
  // Predicated region
  $region14: #{cross_entropy_qa_loss.1} parent=0 // pred_check
    _
  $region15: #{cross_entropy_qa_loss.1} parent=0 // pred_check_branch
    %1043 = sbr.rel (0) target = $region17
  $region16: #{cross_entropy_qa_loss.1} parent=0 // pred_region
    _
  $region17: #{cross_entropy_qa_loss.1} parent=0 // pred_fallthru
    _
  // Predicated region
  $region18: #{cross_entropy_qa_loss.1} parent=0 // pred_check
    _
  $region19: #{cross_entropy_qa_loss.1} parent=0 // pred_check_branch
    %1045 = sbr.rel (0) target = $region21
  $region20: #{cross_entropy_qa_loss.1} parent=0 // pred_region
    _
  $region21: #{cross_entropy_qa_loss.1} parent=0 // pred_fallthru
    _

</llo_original>
